<compile_context>
chip_gen: v5e
topology: v5e:2x2
jax: 0.10.0
libtpu: 0.0.40
codegen_flags: <defaults>
</compile_context>

<pallas_src>
import jax
import jax.numpy as jnp
from jax.experimental import pallas as pl
from jax.experimental.pallas import tpu as pltpu


def _round_up(n, m):
    return ((n + m - 1) // m) * m


def _swiglu_mlp_kernel(x_ref, wg_ref, bg_ref, wu_ref, bu_ref, wd_ref, bd_ref,
                       o_ref, acc_ref):
    k = pl.program_id(1)

    @pl.when(k == 0)
    def _init():
        acc_ref[...] = jnp.zeros_like(acc_ref)

    x = x_ref[...]                                                 # [tm, Hp]
    # gate projection + SiLU (f32 intermediates; single downcast before the
    # down-proj matmul keeps MXU at input-dtype rate).
    g = jnp.dot(x, wg_ref[...], preferred_element_type=jnp.float32) + bg_ref[...]
    g = g * jax.nn.sigmoid(g)                                      # silu, [tm, ti]
    # up projection
    u = jnp.dot(x, wu_ref[...], preferred_element_type=jnp.float32) + bu_ref[...]
    h = (g * u).astype(wd_ref.dtype)                               # [tm, ti]
    # partial down projection, accumulated over the I axis
    acc_ref[...] += jnp.dot(h, wd_ref[...], preferred_element_type=jnp.float32)

    @pl.when(k == pl.num_programs(1) - 1)
    def _finalize():
        o_ref[...] = (acc_ref[...] + bd_ref[...]).astype(o_ref.dtype)


def swiglu_mlp(x, wg, bg, wu, bu, wd, bd, *, tm=256, ti=512):
    """x: [..., H]; weights in PyTorch nn.Linear layout:
       wg, wu: [I, H], bg, bu: [I]; wd: [H, I], bd: [H]."""
    orig_shape = x.shape
    H = orig_shape[-1]
    I = wg.shape[0]
    x2 = x.reshape(-1, H)                                          # [T, H]
    T = x2.shape[0]

    # ---- tile sizing & padding -------------------------------------------
    Hp = _round_up(H, 128)                       # lane-dense output/inner dim
    tm = min(tm, _round_up(T, 16))               # token tile (sublane granule)
    Tp = _round_up(T, tm)
    ti = min(ti, _round_up(I, 128))              # intermediate tile (lane mult)
    Ip = _round_up(I, ti)

    # zero-pad inputs/weights; zero padding is exact for SwiGLU + linear.
    xp = jnp.pad(x2, ((0, Tp - T), (0, Hp - H)))
    wg_t = jnp.pad(wg.T, ((0, Hp - H), (0, Ip - I)))               # [Hp, Ip]
    wu_t = jnp.pad(wu.T, ((0, Hp - H), (0, Ip - I)))               # [Hp, Ip]
    wd_t = jnp.pad(wd.T, ((0, Ip - I), (0, Hp - H)))               # [Ip, Hp]
    bg2 = jnp.pad(bg.reshape(1, I), ((0, 0), (0, Ip - I)))
    bu2 = jnp.pad(bu.reshape(1, I), ((0, 0), (0, Ip - I)))
    bd2 = jnp.pad(bd.reshape(1, H), ((0, 0), (0, Hp - H)))

    grid = (Tp // tm, Ip // ti)

    # advisory cost estimate for XLA's scheduler (unpadded problem size)
    itemsize = jnp.dtype(x.dtype).itemsize
    w_itemsize = jnp.dtype(wg.dtype).itemsize
    cost = pl.CostEstimate(
        flops=6 * T * H * I + 4 * T * I,
        transcendentals=T * I,
        bytes_accessed=(2 * T * H * itemsize
                        + 3 * H * I * w_itemsize
                        + (2 * I + H) * w_itemsize),
    )

    out = pl.pallas_call(
        _swiglu_mlp_kernel,
        out_shape=jax.ShapeDtypeStruct((Tp, Hp), x.dtype),
        grid_spec=pltpu.PrefetchScalarGridSpec(
            num_scalar_prefetch=0,
            grid=grid,
            in_specs=[
                pl.BlockSpec((tm, Hp), lambda i, k: (i, 0)),       # x tile
                pl.BlockSpec((Hp, ti), lambda i, k: (0, k)),       # gate weight
                pl.BlockSpec((1, ti), lambda i, k: (0, k)),        # gate bias
                pl.BlockSpec((Hp, ti), lambda i, k: (0, k)),       # up weight
                pl.BlockSpec((1, ti), lambda i, k: (0, k)),        # up bias
                pl.BlockSpec((ti, Hp), lambda i, k: (k, 0)),       # down weight
                pl.BlockSpec((1, Hp), lambda i, k: (0, 0)),        # down bias
            ],
            out_specs=pl.BlockSpec((tm, Hp), lambda i, k: (i, 0)),
            scratch_shapes=[pltpu.VMEM((tm, Hp), jnp.float32)],    # down-proj acc
        ),
        compiler_params=pltpu.CompilerParams(
            dimension_semantics=("parallel", "arbitrary"),
            vmem_limit_bytes=56 * 1024 * 1024,   # safe on v7x (64 MiB/TC), fine on v5e/v6e
        ),
        cost_estimate=cost,
    )(xp, wg_t, bg2, wu_t, bu2, wd_t, bd2)

    return out[:T, :H].reshape(orig_shape)


def _reference(x, wg, bg, wu, bu, wd, bd):
    g = x @ wg.T + bg
    g = g * jax.nn.sigmoid(g)
    u = x @ wu.T + bu
    return (g * u) @ wd.T + bd


if __name__ == "__main__":
    key = jax.random.PRNGKey(0)
    batch, seq, hidden, intermediate = 2, 8, 32, 64

    k = jax.random.split(key, 7)
    x = jax.random.normal(k[0], (batch, seq, hidden), dtype=jnp.float32)
    # deterministic parameter init (uniform, roughly like nn.Linear default scale)
    wg = jax.random.uniform(k[1], (intermediate, hidden), jnp.float32, -0.1, 0.1)
    bg = jax.random.uniform(k[2], (intermediate,), jnp.float32, -0.1, 0.1)
    wu = jax.random.uniform(k[3], (intermediate, hidden), jnp.float32, -0.1, 0.1)
    bu = jax.random.uniform(k[4], (intermediate,), jnp.float32, -0.1, 0.1)
    wd = jax.random.uniform(k[5], (hidden, intermediate), jnp.float32, -0.1, 0.1)
    bd = jax.random.uniform(k[6], (hidden,), jnp.float32, -0.1, 0.1)

    out = swiglu_mlp(x, wg, bg, wu, bu, wd, bd)
    out = jax.block_until_ready(out)

    ref = _reference(x, wg, bg, wu, bu, wd, bd)
    assert out.shape == ref.shape == (batch, seq, hidden)
    assert jnp.allclose(out, ref, atol=1e-5, rtol=1e-5), "mismatch vs reference"

    print("KERNEL_OK")
</pallas_src>

<mosaic_0001>
module attributes {stable_mosaic.version = 11 : i64} {
  func.func @_swiglu_mlp_kernel(%arg0: i32, %arg1: i32, %arg2: memref<16x128xf32, #tpu.memory_space<vmem>>, %arg3: memref<128x128xf32, #tpu.memory_space<vmem>>, %arg4: memref<1x128xf32, #tpu.memory_space<vmem>>, %arg5: memref<128x128xf32, #tpu.memory_space<vmem>>, %arg6: memref<1x128xf32, #tpu.memory_space<vmem>>, %arg7: memref<128x128xf32, #tpu.memory_space<vmem>>, %arg8: memref<1x128xf32, #tpu.memory_space<vmem>>, %arg9: memref<16x128xf32, #tpu.memory_space<vmem>>, %arg10: memref<16x128xf32, #tpu.memory_space<vmem>>) attributes {dimension_semantics = [#tpu.dimension_semantics<parallel>, #tpu.dimension_semantics<arbitrary>], iteration_bounds = array<i64: 1, 1>, scalar_prefetch = 0 : i64, scratch_operands = 1 : i64, tpu.core_type = #tpu.core_type<tc>, window_params = [{transform_indices = @transform_0, window_bounds = array<i64: 16, 128>}, {transform_indices = @transform_1, window_bounds = array<i64: 128, 128>}, {transform_indices = @transform_2, window_bounds = array<i64: 1, 128>}, {transform_indices = @transform_3, window_bounds = array<i64: 128, 128>}, {transform_indices = @transform_4, window_bounds = array<i64: 1, 128>}, {transform_indices = @transform_5, window_bounds = array<i64: 128, 128>}, {pipeline_mode = #tpu.pipeline_mode<synchronous>, transform_indices = @transform_6, window_bounds = array<i64: 1, 128>}, {transform_indices = @transform_7, window_bounds = array<i64: 16, 128>}]} {
    %c0_i32 = arith.constant 0 : i32
    %0 = arith.cmpi eq, %arg1, %c0_i32 : i32
    %1 = arith.extui %0 : i1 to i32
    %c0_i32_0 = arith.constant 0 : i32
    %2 = arith.cmpi ne, %1, %c0_i32_0 : i32
    scf.if %2 {
      %cst_21 = arith.constant 0.000000e+00 : f32
      %29 = vector.broadcast %cst_21 : f32 to vector<16x128xf32>
      %c0_22 = arith.constant 0 : index
      %c0_23 = arith.constant 0 : index
      %30 = vector.load %arg10[%c0_22, %c0_23] : memref<16x128xf32, #tpu.memory_space<vmem>>, vector<16x128xf32>
      tpu.vector_store %arg10[%c0_22, %c0_23], %29 {strides = array<i32>} : memref<16x128xf32, #tpu.memory_space<vmem>>, vector<16x128xf32>,
    } else {
    }
    %c0 = arith.constant 0 : index
    %c0_1 = arith.constant 0 : index
    %3 = vector.load %arg2[%c0, %c0_1] : memref<16x128xf32, #tpu.memory_space<vmem>>, vector<16x128xf32>
    %c0_2 = arith.constant 0 : index
    %c0_3 = arith.constant 0 : index
    %4 = vector.load %arg3[%c0_2, %c0_3] : memref<128x128xf32, #tpu.memory_space<vmem>>, vector<128x128xf32>
    %cst = arith.constant dense<0.000000e+00> : vector<16x128xf32>
    %5 = tpu.matmul %3, %4, %cst {dimension_numbers = #tpu.dot_dimension_numbers<[1], [0], [0], [1], [0, 0, 1, 1], [], []>} : vector<16x128xf32>, vector<128x128xf32>, vector<16x128xf32> -> vector<16x128xf32>
    %c0_4 = arith.constant 0 : index
    %c0_5 = arith.constant 0 : index
    %6 = vector.load %arg4[%c0_4, %c0_5] : memref<1x128xf32, #tpu.memory_space<vmem>>, vector<1x128xf32>
    %7 = vector.broadcast %6 : vector<1x128xf32> to vector<16x128xf32>
    %8 = arith.addf %5, %7 : vector<16x128xf32>
    %9 = arith.negf %8 : vector<16x128xf32>
    %10 = math.exp %9 : vector<16x128xf32>
    %cst_6 = arith.constant 1.000000e+00 : f32
    %11 = vector.broadcast %cst_6 : f32 to vector<16x128xf32>
    %12 = arith.addf %11, %10 : vector<16x128xf32>
    %13 = arith.divf %11, %12 : vector<16x128xf32>
    %14 = arith.mulf %8, %13 : vector<16x128xf32>
    %c0_7 = arith.constant 0 : index
    %c0_8 = arith.constant 0 : index
    %15 = vector.load %arg5[%c0_7, %c0_8] : memref<128x128xf32, #tpu.memory_space<vmem>>, vector<128x128xf32>
    %cst_9 = arith.constant dense<0.000000e+00> : vector<16x128xf32>
    %16 = tpu.matmul %3, %15, %cst_9 {dimension_numbers = #tpu.dot_dimension_numbers<[1], [0], [0], [1], [0, 0, 1, 1], [], []>} : vector<16x128xf32>, vector<128x128xf32>, vector<16x128xf32> -> vector<16x128xf32>
    %c0_10 = arith.constant 0 : index
    %c0_11 = arith.constant 0 : index
    %17 = vector.load %arg6[%c0_10, %c0_11] : memref<1x128xf32, #tpu.memory_space<vmem>>, vector<1x128xf32>
    %18 = vector.broadcast %17 : vector<1x128xf32> to vector<16x128xf32>
    %19 = arith.addf %16, %18 : vector<16x128xf32>
    %20 = arith.mulf %14, %19 : vector<16x128xf32>
    %c0_12 = arith.constant 0 : index
    %c0_13 = arith.constant 0 : index
    %21 = vector.load %arg10[%c0_12, %c0_13] : memref<16x128xf32, #tpu.memory_space<vmem>>, vector<16x128xf32>
    %c0_14 = arith.constant 0 : index
    %c0_15 = arith.constant 0 : index
    %22 = vector.load %arg7[%c0_14, %c0_15] : memref<128x128xf32, #tpu.memory_space<vmem>>, vector<128x128xf32>
    %cst_16 = arith.constant dense<0.000000e+00> : vector<16x128xf32>
    %23 = tpu.matmul %20, %22, %cst_16 {dimension_numbers = #tpu.dot_dimension_numbers<[1], [0], [0], [1], [0, 0, 1, 1], [], []>} : vector<16x128xf32>, vector<128x128xf32>, vector<16x128xf32> -> vector<16x128xf32>
    %24 = arith.addf %21, %23 : vector<16x128xf32>
    %c0_17 = arith.constant 0 : index
    %c0_18 = arith.constant 0 : index
    %25 = vector.load %arg10[%c0_17, %c0_18] : memref<16x128xf32, #tpu.memory_space<vmem>>, vector<16x128xf32>
    tpu.vector_store %arg10[%c0_17, %c0_18], %24 {strides = array<i32>} : memref<16x128xf32, #tpu.memory_space<vmem>>, vector<16x128xf32>,
    %c0_i32_19 = arith.constant 0 : i32
    %26 = arith.cmpi eq, %arg1, %c0_i32_19 : i32
    %27 = arith.extui %26 : i1 to i32
    %c0_i32_20 = arith.constant 0 : i32
    %28 = arith.cmpi ne, %27, %c0_i32_20 : i32
    scf.if %28 {
      %c0_21 = arith.constant 0 : index
      %c0_22 = arith.constant 0 : index
      %29 = vector.load %arg10[%c0_21, %c0_22] : memref<16x128xf32, #tpu.memory_space<vmem>>, vector<16x128xf32>
      %c0_23 = arith.constant 0 : index
      %c0_24 = arith.constant 0 : index
      %30 = vector.load %arg8[%c0_23, %c0_24] : memref<1x128xf32, #tpu.memory_space<vmem>>, vector<1x128xf32>
      %31 = vector.broadcast %30 : vector<1x128xf32> to vector<16x128xf32>
      %32 = arith.addf %29, %31 : vector<16x128xf32>
      %c0_25 = arith.constant 0 : index
      %c0_26 = arith.constant 0 : index
      %33 = vector.load %arg9[%c0_25, %c0_26] : memref<16x128xf32, #tpu.memory_space<vmem>>, vector<16x128xf32>
      tpu.vector_store %arg9[%c0_25, %c0_26], %32 {strides = array<i32>} : memref<16x128xf32, #tpu.memory_space<vmem>>, vector<16x128xf32>,
    } else {
    }
    return
  }
  func.func @transform_0(%arg0: i32, %arg1: i32) -> (i32, i32) {
    %c0_i32 = arith.constant 0 : i32
    %c0_i32_0 = arith.constant 0 : i32
    return %arg0, %c0_i32 : i32, i32
  }
  func.func @transform_1(%arg0: i32, %arg1: i32) -> (i32, i32) {
    %c0_i32 = arith.constant 0 : i32
    %c0_i32_0 = arith.constant 0 : i32
    return %c0_i32, %arg1 : i32, i32
  }
  func.func @transform_2(%arg0: i32, %arg1: i32) -> (i32, i32) {
    %c0_i32 = arith.constant 0 : i32
    %c0_i32_0 = arith.constant 0 : i32
    return %c0_i32, %arg1 : i32, i32
  }
  func.func @transform_3(%arg0: i32, %arg1: i32) -> (i32, i32) {
    %c0_i32 = arith.constant 0 : i32
    %c0_i32_0 = arith.constant 0 : i32
    return %c0_i32, %arg1 : i32, i32
  }
  func.func @transform_4(%arg0: i32, %arg1: i32) -> (i32, i32) {
    %c0_i32 = arith.constant 0 : i32
    %c0_i32_0 = arith.constant 0 : i32
    return %c0_i32, %arg1 : i32, i32
  }
  func.func @transform_5(%arg0: i32, %arg1: i32) -> (i32, i32) {
    %c0_i32 = arith.constant 0 : i32
    %c0_i32_0 = arith.constant 0 : i32
    return %arg1, %c0_i32 : i32, i32
  }
  func.func @transform_6(%arg0: i32, %arg1: i32) -> (i32, i32) {
    %c0_i32 = arith.constant 0 : i32
    %c0_i32_0 = arith.constant 0 : i32
    %c0_i32_1 = arith.constant 0 : i32
    return %c0_i32, %c0_i32_0 : i32, i32
  }
  func.func @transform_7(%arg0: i32, %arg1: i32) -> (i32, i32) {
    %c0_i32 = arith.constant 0 : i32
    %c0_i32_0 = arith.constant 0 : i32
    return %arg0, %c0_i32 : i32, i32
  }
}

</mosaic_0001>

<llo_original>
// kernel: tpu_custom_call.1
$region0: #{tpu_custom_call.1}
  #allocation0 [shape = 'u32[]', space=smem, size = 0x4, offset = 0x4, fixed_abs, tag = 'smem constant byte address 0x4 - core index']
  #allocation1 [shape = 'u32[72,128]{1,0:T(1,128)}', space=vmem, size = 0x9000, scoped, tag = 'internal scratch']
  #allocation2 [shape = 'f32[16,128]{1,0:T(8,128)}', space=vmem, size = 0x2000, scoped, tag = 'scratch operand']
  %s0 = inlined_call_operand.hbm [shape: f32[16,128], index: 0, kind: input, shape index: {}]
  %s1 = inlined_call_operand.hbm [shape: f32[128,128], index: 1, kind: input, shape index: {}]
  %s2 = inlined_call_operand.vmem [shape: f32[1,128], index: 2, kind: input, shape index: {}]
  %s3 = inlined_call_operand.hbm [shape: f32[128,128], index: 3, kind: input, shape index: {}]
  %s4 = inlined_call_operand.vmem [shape: f32[1,128], index: 4, kind: input, shape index: {}]
  %s5 = inlined_call_operand.hbm [shape: f32[128,128], index: 5, kind: input, shape index: {}]
  %s6 = inlined_call_operand.vmem [shape: f32[1,128], index: 6, kind: input, shape index: {}]
  %s7 = inlined_call_operand.hbm [shape: f32[16,128], index: 7, kind: output, shape index: {}]
  %s8 = sld [smem:[#allocation0]]
  $region62: #{tpu_custom_call.1} parent=0
    _
  %s10 = ssub.s32 1, %s8
  %s11 = scalar_select 0, %s10, %s8
  $region1: #{tpu_custom_call.1} parent=0
    #allocation3 [shape = 'u8[8192]{0}', space=vmem, size = 0x2000, scoped, tag = 'input window, operand 0, single buffered']
    #allocation4 [shape = 's32[1]{0}', space=sflag, size = 0x4, scoped, tag = 'scoped memory for tpu_custom_call.1']
    #allocation5 [shape = 's32[1]{0}', space=sflag, size = 0x4, scoped, tag = 'scoped memory for tpu_custom_call.1']
    #allocation6 [shape = 'u8[65536]{0}', space=vmem, size = 0x10000, scoped, tag = 'input window, operand 1, single buffered']
    #allocation7 [shape = 's32[1]{0}', space=sflag, size = 0x4, scoped, tag = 'scoped memory for tpu_custom_call.1']
    #allocation8 [shape = 'u8[65536]{0}', space=vmem, size = 0x10000, scoped, tag = 'input window, operand 3, single buffered']
    #allocation9 [shape = 'u8[65536]{0}', space=vmem, size = 0x10000, scoped, tag = 'input window, operand 5, single buffered']
    #allocation10 [shape = 's32[1]{0}', space=sflag, size = 0x4, scoped, tag = 'scoped memory for tpu_custom_call.1']
    #allocation11 [shape = 'u8[8192]{0}', space=vmem, size = 0x2000, scoped, tag = 'output window, operand 0, single buffered']
    %12 = vsyncpa [#allocation4], 0
    %13 = vsyncpa [#allocation7], 0
    %14 = vsyncpa [#allocation10], 0
    %15 = vsyncpa [#allocation5], 0
    // Predicated region
    $region2: #{tpu_custom_call.1} parent=1 // pred_check
      _
    $region3: #{tpu_custom_call.1} parent=1 // pred_check_branch
      %17 = sbr.rel (0) target = $region5
    $region4: #{tpu_custom_call.1} parent=1 // pred_region
      %19 = vsyncadd [#allocation4], 0
      %s20 = sshll.u32 %s0, 4
      %s21 = int_to_ptr.hbm [resolvable:$true] %s20
      %s22 = sshll.u32 [#allocation3], 4
      %s23 = int_to_ptr.vmem [resolvable:$true] %s22
      %28 = dma.hbm_to_vmem [thread:$0]  %s21, 256, %s23, [#allocation4], 128, 128, 8
    $region5: #{tpu_custom_call.1} parent=1 // pred_fallthru
      _
    // Predicated region
    $region6: #{tpu_custom_call.1} parent=1 // pred_check
      _
    $region7: #{tpu_custom_call.1} parent=1 // pred_check_branch
      %30 = sbr.rel (0) target = $region9
    $region8: #{tpu_custom_call.1} parent=1 // pred_region
      %32 = vsyncadd [#allocation7], 0
      %s33 = sshll.u32 %s1, 4
      %s34 = int_to_ptr.hbm [resolvable:$true] %s33
      %s35 = sshll.u32 [#allocation6], 4
      %s36 = int_to_ptr.vmem [resolvable:$true] %s35
      %41 = dma.hbm_to_vmem [thread:$0]  %s34, 2048, %s36, [#allocation7], 128, 128, 8
    $region9: #{tpu_custom_call.1} parent=1 // pred_fallthru
      _
    // Predicated region
    $region10: #{tpu_custom_call.1} parent=1 // pred_check
      _
    $region11: #{tpu_custom_call.1} parent=1 // pred_check_branch
      %43 = sbr.rel (0) target = $region13
    $region12: #{tpu_custom_call.1} parent=1 // pred_region
      _
    $region13: #{tpu_custom_call.1} parent=1 // pred_fallthru
      _
    // Predicated region
    $region14: #{tpu_custom_call.1} parent=1 // pred_check
      _
    $region15: #{tpu_custom_call.1} parent=1 // pred_check_branch
      %45 = sbr.rel (0) target = $region17
    $region16: #{tpu_custom_call.1} parent=1 // pred_region
      %47 = vsyncadd [#allocation7], 0
      %s48 = sshll.u32 %s3, 4
      %s49 = int_to_ptr.hbm [resolvable:$true] %s48
      %s50 = sshll.u32 [#allocation8], 4
      %s51 = int_to_ptr.vmem [resolvable:$true] %s50
      %56 = dma.hbm_to_vmem [thread:$0]  %s49, 2048, %s51, [#allocation7], 128, 128, 8
    $region17: #{tpu_custom_call.1} parent=1 // pred_fallthru
      _
    // Predicated region
    $region18: #{tpu_custom_call.1} parent=1 // pred_check
      _
    $region19: #{tpu_custom_call.1} parent=1 // pred_check_branch
      %58 = sbr.rel (0) target = $region21
    $region20: #{tpu_custom_call.1} parent=1 // pred_region
      _
    $region21: #{tpu_custom_call.1} parent=1 // pred_fallthru
      _
    // Predicated region
    $region22: #{tpu_custom_call.1} parent=1 // pred_check
      _
    $region23: #{tpu_custom_call.1} parent=1 // pred_check_branch
      %60 = sbr.rel (0) target = $region25
    $region24: #{tpu_custom_call.1} parent=1 // pred_region
      %62 = vsyncadd [#allocation10], 0
      %s63 = sshll.u32 %s5, 4
      %s64 = int_to_ptr.hbm [resolvable:$true] %s63
      %s65 = sshll.u32 [#allocation9], 4
      %s66 = int_to_ptr.vmem [resolvable:$true] %s65
      %71 = dma.hbm_to_vmem [thread:$0]  %s64, 2048, %s66, [#allocation10], 128, 128, 8
    $region25: #{tpu_custom_call.1} parent=1 // pred_fallthru
      _
    // Predicated region
    $region26: #{tpu_custom_call.1} parent=1 // pred_check
      _
    $region27: #{tpu_custom_call.1} parent=1 // pred_check_branch
      %73 = sbr.rel (0) target = $region29
    $region28: #{tpu_custom_call.1} parent=1 // pred_region
      _
    $region29: #{tpu_custom_call.1} parent=1 // pred_fallthru
      _
    // Predicated region
    $region30: #{tpu_custom_call.1} parent=1 // pred_check
      _
    $region31: #{tpu_custom_call.1} parent=1 // pred_check_branch
      %75 = sbr.rel (0) target = $region33
    $region32: #{tpu_custom_call.1} parent=1 // pred_region
      %77 = dma.done [#allocation4], 256
    $region33: #{tpu_custom_call.1} parent=1 // pred_fallthru
      _
    // Predicated region
    $region34: #{tpu_custom_call.1} parent=1 // pred_check
      _
    $region35: #{tpu_custom_call.1} parent=1 // pred_check_branch
      %79 = sbr.rel (0) target = $region37
    $region36: #{tpu_custom_call.1} parent=1 // pred_region
      %81 = dma.done [#allocation7], 2048
    $region37: #{tpu_custom_call.1} parent=1 // pred_fallthru
      _
    // Predicated region
    $region38: #{tpu_custom_call.1} parent=1 // pred_check
      _
    $region39: #{tpu_custom_call.1} parent=1 // pred_check_branch
      %83 = sbr.rel (0) target = $region41
    $region40: #{tpu_custom_call.1} parent=1 // pred_region
      %85 = dma.done [#allocation7], 2048
    $region41: #{tpu_custom_call.1} parent=1 // pred_fallthru
      _
    // Predicated region
    $region42: #{tpu_custom_call.1} parent=1 // pred_check
      _
    $region43: #{tpu_custom_call.1} parent=1 // pred_check_branch
      %87 = sbr.rel (0) target = $region45
    $region44: #{tpu_custom_call.1} parent=1 // pred_region
      %89 = dma.done [#allocation10], 2048
    $region45: #{tpu_custom_call.1} parent=1 // pred_fallthru
      _
    %p90 = scmp.eq.s32.totalorder 0, 0
    // Predicated region
    $region46: #{tpu_custom_call.1} parent=1 // pred_check
      %p91 = pneg %p90
    $region47: #{tpu_custom_call.1} parent=1 // pred_check_branch
      %93 = sbr.rel (%p91) target = $region49
    $region48: #{tpu_custom_call.1} parent=1 // pred_region
      %94 = vst [vmem:[#allocation2] sm:$0xff] 0.0
      %95 = vst [vmem:[#allocation2 + $0x8] sm:$0xff] 0.0
    $region49: #{tpu_custom_call.1} parent=1 // pred_fallthru
      _
    %v96 = vld [vmem:[#allocation3] sm:$0xff]
    %v97 = vld [vmem:[#allocation3 + $0x8] sm:$0xff]
    %v98 = vld [vmem:[#allocation6] sm:$0xff]
    %v99 = vld [vmem:[#allocation6 + $0x8] sm:$0xff]
    %v100 = vld [vmem:[#allocation6 + $0x10] sm:$0xff]
    %v101 = vld [vmem:[#allocation6 + $0x18] sm:$0xff]
    %v102 = vld [vmem:[#allocation6 + $0x20] sm:$0xff]
    %v103 = vld [vmem:[#allocation6 + $0x28] sm:$0xff]
    %v104 = vld [vmem:[#allocation6 + $0x30] sm:$0xff]
    %v105 = vld [vmem:[#allocation6 + $0x38] sm:$0xff]
    %v106 = vld [vmem:[#allocation6 + $0x40] sm:$0xff]
    %v107 = vld [vmem:[#allocation6 + $0x48] sm:$0xff]
    %v108 = vld [vmem:[#allocation6 + $0x50] sm:$0xff]
    %v109 = vld [vmem:[#allocation6 + $0x58] sm:$0xff]
    %v110 = vld [vmem:[#allocation6 + $0x60] sm:$0xff]
    %v111 = vld [vmem:[#allocation6 + $0x68] sm:$0xff]
    %v112 = vld [vmem:[#allocation6 + $0x70] sm:$0xff]
    %v113 = vld [vmem:[#allocation6 + $0x78] sm:$0xff]
    %v114 = vld [vmem:[%s2] sm:$0x1]
    %v116 = vperm.slane %v114, 0
    %118 = vmatpush.msra.mxu0 %v113
    %119 = vmatpush.msra.mxu0 %v112
    %120 = vmatpush.msra.mxu0 %v111
    %121 = vmatpush.msra.mxu0 %v110
    %122 = vmatpush.msra.mxu0 %v109
    %123 = vmatpush.msra.mxu0 %v108
    %124 = vmatpush.msra.mxu0 %v107
    %125 = vmatpush.msra.mxu0 %v106
    %126 = vmatpush.msra.mxu0 %v105
    %127 = vmatpush.msra.mxu0 %v104
    %128 = vmatpush.msra.mxu0 %v103
    %129 = vmatpush.msra.mxu0 %v102
    %130 = vmatpush.msra.mxu0 %v101
    %131 = vmatpush.msra.mxu0 %v100
    %132 = vmatpush.msra.mxu0 %v99
    %133 = vmatpush.msra.mxu0 %v98
    %134 = vmatmul.f32.gmra.mxu0 %v96
    %v135 = vpop.f32.mrf.mxu0
    %v136 = vadd.f32 %v116, %v135
    %137 = vmatmul.f32.gmra.mxu0 %v97
    %v138 = vpop.f32.mrf.mxu0
    %v139 = vadd.f32 %v116, %v138
    %140 = vdwg.mxu0
    %v141 = vxor.u32 %v136, 2147483648
    %v142 = vxor.u32 %v139, 2147483648
    %v143 = vmul.f32 %v141, 1.442695
    %v144 = vpow.pop %v143
    %v145 = vmul.f32 %v142, 1.442695
    %v146 = vpow.pop %v145
    %v147 = vadd.f32 %v144, 1.0
    %v148 = vadd.f32 %v146, 1.0
    %v149 = vrcp.pop %v147
    %v150 = vmul.f32 %v147, %v149
    %v151 = vsub.f32 1.0, %v150
    %v152 = vmul.f32 %v149, %v151
    %v153 = vadd.f32 %v149, %v152
    %vm154 = vweird.f32 %v147
    %vm155 = vweird.f32 %v149
    %vm156 = vmor %vm154, %vm155
    %v157 = vsel %vm156, %v149, %v153
    %v158 = vand.u32 2147483647, %v147
    %vm159 = vcmp.eq.f32.partialorder %v158, 8.507059e+37
    %v160 = vand.u32 %v147, 2147483648
    %v161 = vor.u32 1.1754944e-38, %v160
    %v162 = vsel %vm159, %v161, %v157
    %v163 = vmul.f32 1.0, %v162
    %v164 = vrcp.pop %v148
    %v165 = vmul.f32 %v148, %v164
    %v166 = vsub.f32 1.0, %v165
    %v167 = vmul.f32 %v164, %v166
    %v168 = vadd.f32 %v164, %v167
    %vm169 = vweird.f32 %v148
    %vm170 = vweird.f32 %v164
    %vm171 = vmor %vm169, %vm170
    %v172 = vsel %vm171, %v164, %v168
    %v173 = vand.u32 2147483647, %v148
    %vm174 = vcmp.eq.f32.partialorder %v173, 8.507059e+37
    %v175 = vand.u32 %v148, 2147483648
    %v176 = vor.u32 1.1754944e-38, %v175
    %v177 = vsel %vm174, %v176, %v172
    %v178 = vmul.f32 1.0, %v177
    %v179 = vmul.f32 %v136, %v163
    %v180 = vmul.f32 %v139, %v178
    %v181 = vld [vmem:[#allocation8] sm:$0xff]
    %v182 = vld [vmem:[#allocation8 + $0x8] sm:$0xff]
    %v183 = vld [vmem:[#allocation8 + $0x10] sm:$0xff]
    %v184 = vld [vmem:[#allocation8 + $0x18] sm:$0xff]
    %v185 = vld [vmem:[#allocation8 + $0x20] sm:$0xff]
    %v186 = vld [vmem:[#allocation8 + $0x28] sm:$0xff]
    %v187 = vld [vmem:[#allocation8 + $0x30] sm:$0xff]
    %v188 = vld [vmem:[#allocation8 + $0x38] sm:$0xff]
    %v189 = vld [vmem:[#allocation8 + $0x40] sm:$0xff]
    %v190 = vld [vmem:[#allocation8 + $0x48] sm:$0xff]
    %v191 = vld [vmem:[#allocation8 + $0x50] sm:$0xff]
    %v192 = vld [vmem:[#allocation8 + $0x58] sm:$0xff]
    %v193 = vld [vmem:[#allocation8 + $0x60] sm:$0xff]
    %v194 = vld [vmem:[#allocation8 + $0x68] sm:$0xff]
    %v195 = vld [vmem:[#allocation8 + $0x70] sm:$0xff]
    %v196 = vld [vmem:[#allocation8 + $0x78] sm:$0xff]
    %v197 = vld [vmem:[%s4] sm:$0x1]
    %v199 = vperm.slane %v197, 0
    %201 = vmatpush.msra.mxu0 %v196
    %202 = vmatpush.msra.mxu0 %v195
    %203 = vmatpush.msra.mxu0 %v194
    %204 = vmatpush.msra.mxu0 %v193
    %205 = vmatpush.msra.mxu0 %v192
    %206 = vmatpush.msra.mxu0 %v191
    %207 = vmatpush.msra.mxu0 %v190
    %208 = vmatpush.msra.mxu0 %v189
    %209 = vmatpush.msra.mxu0 %v188
    %210 = vmatpush.msra.mxu0 %v187
    %211 = vmatpush.msra.mxu0 %v186
    %212 = vmatpush.msra.mxu0 %v185
    %213 = vmatpush.msra.mxu0 %v184
    %214 = vmatpush.msra.mxu0 %v183
    %215 = vmatpush.msra.mxu0 %v182
    %216 = vmatpush.msra.mxu0 %v181
    %217 = vmatmul.f32.gmra.mxu0 %v96
    %v218 = vpop.f32.mrf.mxu0
    %v219 = vadd.f32 %v199, %v218
    %220 = vmatmul.f32.gmra.mxu0 %v97
    %v221 = vpop.f32.mrf.mxu0
    %v222 = vadd.f32 %v199, %v221
    %223 = vdwg.mxu0
    %v224 = vmul.f32 %v179, %v219
    %v225 = vmul.f32 %v180, %v222
    %v226 = vld [vmem:[#allocation2] sm:$0xff]
    %v227 = vld [vmem:[#allocation2 + $0x8] sm:$0xff]
    %v228 = vld [vmem:[#allocation9] sm:$0xff]
    %v229 = vld [vmem:[#allocation9 + $0x8] sm:$0xff]
    %v230 = vld [vmem:[#allocation9 + $0x10] sm:$0xff]
    %v231 = vld [vmem:[#allocation9 + $0x18] sm:$0xff]
    %v232 = vld [vmem:[#allocation9 + $0x20] sm:$0xff]
    %v233 = vld [vmem:[#allocation9 + $0x28] sm:$0xff]
    %v234 = vld [vmem:[#allocation9 + $0x30] sm:$0xff]
    %v235 = vld [vmem:[#allocation9 + $0x38] sm:$0xff]
    %v236 = vld [vmem:[#allocation9 + $0x40] sm:$0xff]
    %v237 = vld [vmem:[#allocation9 + $0x48] sm:$0xff]
    %v238 = vld [vmem:[#allocation9 + $0x50] sm:$0xff]
    %v239 = vld [vmem:[#allocation9 + $0x58] sm:$0xff]
    %v240 = vld [vmem:[#allocation9 + $0x60] sm:$0xff]
    %v241 = vld [vmem:[#allocation9 + $0x68] sm:$0xff]
    %v242 = vld [vmem:[#allocation9 + $0x70] sm:$0xff]
    %v243 = vld [vmem:[#allocation9 + $0x78] sm:$0xff]
    %244 = vmatpush.msra.mxu0 %v243
    %245 = vmatpush.msra.mxu0 %v242
    %246 = vmatpush.msra.mxu0 %v241
    %247 = vmatpush.msra.mxu0 %v240
    %248 = vmatpush.msra.mxu0 %v239
    %249 = vmatpush.msra.mxu0 %v238
    %250 = vmatpush.msra.mxu0 %v237
    %251 = vmatpush.msra.mxu0 %v236
    %252 = vmatpush.msra.mxu0 %v235
    %253 = vmatpush.msra.mxu0 %v234
    %254 = vmatpush.msra.mxu0 %v233
    %255 = vmatpush.msra.mxu0 %v232
    %256 = vmatpush.msra.mxu0 %v231
    %257 = vmatpush.msra.mxu0 %v230
    %258 = vmatpush.msra.mxu0 %v229
    %259 = vmatpush.msra.mxu0 %v228
    %260 = vmatmul.f32.gmra.mxu0 %v224
    %v261 = vpop.f32.mrf.mxu0
    %v262 = vadd.f32 0.0, %v261
    %263 = vmatmul.f32.gmra.mxu0 %v225
    %v264 = vpop.f32.mrf.mxu0
    %v265 = vadd.f32 0.0, %v264
    %266 = vdwg.mxu0
    %v267 = vadd.f32 %v226, %v262
    %v268 = vadd.f32 %v227, %v265
    %269 = vst [vmem:[#allocation2] sm:$0xff] %v267
    %270 = vst [vmem:[#allocation2 + $0x8] sm:$0xff] %v268
    // Predicated region
    $region50: #{tpu_custom_call.1} parent=1 // pred_check
      %p271 = pneg %p90
    $region51: #{tpu_custom_call.1} parent=1 // pred_check_branch
      %273 = sbr.rel (%p271) target = $region53
    $region52: #{tpu_custom_call.1} parent=1 // pred_region
      %v274 = vld [vmem:[#allocation2] sm:$0xff]
      %v275 = vld [vmem:[#allocation2 + $0x8] sm:$0xff]
      %v276 = vld [vmem:[%s6] sm:$0x1]
      %v278 = vperm.slane %v276, 0
      %v280 = vadd.f32 %v274, %v278
      %v281 = vadd.f32 %v275, %v278
      %282 = vst [vmem:[#allocation11] sm:$0xff] %v280
      %283 = vst [vmem:[#allocation11 + $0x8] sm:$0xff] %v281
    $region53: #{tpu_custom_call.1} parent=1 // pred_fallthru
      _
    // Predicated region
    $region54: #{tpu_custom_call.1} parent=1 // pred_check
      _
    $region55: #{tpu_custom_call.1} parent=1 // pred_check_branch
      %285 = sbr.rel (0) target = $region57
    $region56: #{tpu_custom_call.1} parent=1 // pred_region
      %287 = vsyncadd [#allocation5], 0
      %s288 = sshll.u32 [#allocation11], 4
      %s289 = int_to_ptr.vmem [resolvable:$true] %s288
      %s290 = sshll.u32 %s7, 4
      %s291 = int_to_ptr.hbm [resolvable:$true] %s290
      %296 = dma.vmem_to_hbm [thread:$0]  %s289, 256, %s291, [#allocation5], 128, 128, 8
    $region57: #{tpu_custom_call.1} parent=1 // pred_fallthru
      _
    // Predicated region
    $region58: #{tpu_custom_call.1} parent=1 // pred_check
      _
    $region59: #{tpu_custom_call.1} parent=1 // pred_check_branch
      %298 = sbr.rel (0) target = $region61
    $region60: #{tpu_custom_call.1} parent=1 // pred_region
      %300 = dma.done [#allocation5], 256
    $region61: #{tpu_custom_call.1} parent=1 // pred_fallthru
      _
    %301 = vsyncpa [#allocation4], 1
    %302 = vsyncpa [#allocation7], 1
    %303 = vsyncpa [#allocation10], 1
    %304 = vsyncpa [#allocation5], 1

</llo_original>
